<compile_context>
chip_gen: v7x
topology: tpu7x:2x2x1
jax: 0.10.0
libtpu: 0.0.40
codegen_flags: <defaults>
</compile_context>

<pallas_src>
import jax
import jax.numpy as jnp
from jax.experimental import pallas as pl
from jax.experimental.pallas import tpu as pltpu


def mlp_kernel(x_ref, w1_ref, b1_ref, w2_ref, b2_ref, o_ref):
    # Layer 1 on the MXU: bf16 operands, f32 accumulation.
    x_bf16 = x_ref[...].astype(jnp.bfloat16)
    h = jnp.dot(x_bf16, w1_ref[...], preferred_element_type=jnp.float32)
    # Bias + ReLU in f32 on the VPU.
    h = jnp.maximum(h + b1_ref[...], 0.0)
    # Layer 2 (hidden -> 1) as [1,H] contracted with [TB,H] on H -> lane-dense [1, TB]
    # row (same contraction pattern as q@k.T), so the store is an unmasked full-lane vst.
    out_row = jnp.einsum("oh,bh->ob", w2_ref[...], h,
                         preferred_element_type=jnp.float32)
    # b2 scalar comes from SMEM.
    o_ref[0] = (out_row + b2_ref[0, 0]).astype(o_ref.dtype)


def _vmem_capacity_bytes():
    """Physical VMEM per TensorCore; conservative (v7x-sized) fallback."""
    try:
        cap = int(pltpu.get_tpu_info().vmem_capacity_bytes)
        if cap > 0:
            return cap
    except Exception:
        pass
    return 64 * 1024 * 1024


def _pick_block_b(batch, d_in, hidden, vmem_budget_bytes):
    """Pick the batch tile TB against a generation-aware VMEM budget."""
    # Resident weights (bf16 W1, f32 b1, f32 w2 row), counted with the default
    # double buffering Pallas allocates even for constant-index BlockSpecs.
    resident = 2 * (d_in * hidden * 2 + hidden * 4 + hidden * 4)
    # Per batch-row VMEM: double-buffered f32 x tile + double-buffered f32 out row,
    # plus the in-kernel bf16 copy of x and the f32 h=[TB,H] intermediate.
    per_row = 2 * (d_in * 4) + 2 * 4 + d_in * 2 + hidden * 4
    if batch <= 8:
        return batch                                   # full-dim block is always legal
    tb = (vmem_budget_bytes - resident) // max(per_row, 1)
    tb = max(8, min(tb, batch, 4096))
    # Guarantee >= 2 grid steps at production batch so both v7x TensorCores get work
    # (harmless single-core loop split elsewhere).
    if batch >= 256:
        tb = min(tb, max(128, ((batch // 2) // 128) * 128))
    # MXU-friendly granularity once the batch allows it.
    if batch >= 128 and tb >= 128:
        tb = (tb // 128) * 128
    else:
        tb = max(8, (tb // 8) * 8)
    return tb


def simple_regressor(x, w1, b1, w2, b2):
    """x: [B, D_in] f32, w1: [D_in, H], b1: [1, H], w2: [H, 1], b2: [1, 1]."""
    batch, d_in = x.shape
    hidden = w1.shape[1]

    vmem_cap = _vmem_capacity_bytes()
    vmem_budget = (vmem_cap * 3) // 4                      # ~48 MiB v7x / ~96 MiB v5e,v6e
    vmem_limit = max(vmem_budget,
                     min(vmem_cap - 8 * 1024 * 1024,       # headroom for compiler scratch
                         vmem_budget + 16 * 1024 * 1024))  # ~56 MiB v7x / ~112 MiB v5e,v6e

    tb = _pick_block_b(batch, d_in, hidden, vmem_budget)
    grid_steps = pl.cdiv(batch, tb)

    w1_bf16 = w1.astype(jnp.bfloat16)                  # resident weight for the bf16 MXU path
    w2_row = w2.reshape(1, hidden).astype(jnp.float32)

    cost = pl.CostEstimate(
        flops=2 * batch * d_in * hidden + 2 * batch * hidden,
        transcendentals=0,
        bytes_accessed=(x.size * 4 + w1_bf16.size * 2 + b1.size * 4
                        + w2_row.size * 4 + b2.size * 4 + grid_steps * tb * 4),
    )

    # Lane-dense output slab: (grid_steps, 1, TB) f32, reshaped to (B, 1) outside.
    out_slab = pl.pallas_call(
        mlp_kernel,
        out_shape=jax.ShapeDtypeStruct((grid_steps, 1, tb), jnp.float32),
        grid=(grid_steps,),
        in_specs=[
            pl.BlockSpec((tb, d_in), lambda i: (i, 0)),         # x tile (double-buffered)
            pl.BlockSpec((d_in, hidden), lambda i: (0, 0)),     # W1 resident
            pl.BlockSpec((1, hidden), lambda i: (0, 0)),        # b1 resident
            pl.BlockSpec((1, hidden), lambda i: (0, 0)),        # w2 row resident
            pl.BlockSpec(memory_space=pltpu.MemorySpace.SMEM),  # b2 scalar in SMEM
        ],
        out_specs=pl.BlockSpec((1, 1, tb), lambda i: (i, 0, 0)),
        compiler_params=pltpu.CompilerParams(
            dimension_semantics=("parallel",),
            vmem_limit_bytes=int(vmem_limit),
        ),
        cost_estimate=cost,
    )(x, w1_bf16, b1, w2_row, b2)

    # Rows past `batch` (Pallas padding of the last tile) are sliced away here.
    return out_slab.reshape(grid_steps * tb, 1)[:batch]


if __name__ == "__main__":
    # Small but MXU/lane-friendly shapes: feature dims padded to 128.
    B, D_IN, HIDDEN = 256, 128, 128

    key = jax.random.PRNGKey(0)
    kx, kw1, kb1, kw2, kb2 = jax.random.split(key, 5)

    x = jax.random.normal(kx, (B, D_IN), dtype=jnp.float32)

    # Deterministic parameter init (Kaiming-uniform-like bounds, fixed seed).
    bound1 = 1.0 / jnp.sqrt(D_IN)
    w1 = jax.random.uniform(kw1, (D_IN, HIDDEN), jnp.float32, -bound1, bound1)
    b1 = jax.random.uniform(kb1, (1, HIDDEN), jnp.float32, -bound1, bound1)
    bound2 = 1.0 / jnp.sqrt(HIDDEN)
    w2 = jax.random.uniform(kw2, (HIDDEN, 1), jnp.float32, -bound2, bound2)
    b2 = jax.random.uniform(kb2, (1, 1), jnp.float32, -bound2, bound2)

    def ref_fn(xv):
        return jnp.maximum(xv @ w1 + b1, 0.0) @ w2 + b2

    # Case 1: batch divisible by the tile (grid has 2 steps -> exercises both-TC split).
    out = jax.block_until_ready(simple_regressor(x, w1, b1, w2, b2))
    assert out.shape == (B, 1)
    assert jnp.allclose(out, ref_fn(x), atol=2e-2, rtol=2e-2), (
        float(jnp.max(jnp.abs(out - ref_fn(x)))))

    # Case 2: batch NOT divisible by the tile (last tile padded, padded rows discarded).
    B2 = 200
    x2 = jax.random.normal(jax.random.PRNGKey(1), (B2, D_IN), dtype=jnp.float32)
    out2 = jax.block_until_ready(simple_regressor(x2, w1, b1, w2, b2))
    assert out2.shape == (B2, 1)
    assert jnp.allclose(out2, ref_fn(x2), atol=2e-2, rtol=2e-2), (
        float(jnp.max(jnp.abs(out2 - ref_fn(x2)))))

    print("KERNEL_OK")
</pallas_src>

<mosaic_0001>
module attributes {stable_mosaic.version = 11 : i64} {
  func.func @mlp_kernel(%arg0: i32, %arg1: memref<128x128xf32, #tpu.memory_space<vmem>>, %arg2: memref<128x128xbf16, #tpu.memory_space<vmem>>, %arg3: memref<1x128xf32, #tpu.memory_space<vmem>>, %arg4: memref<1x128xf32, #tpu.memory_space<vmem>>, %arg5: memref<1x1xf32, #tpu.memory_space<smem>>, %arg6: memref<1x1x128xf32, #tpu.memory_space<vmem>>) attributes {dimension_semantics = [#tpu.dimension_semantics<parallel>], iteration_bounds = array<i64: 2>, scalar_prefetch = 0 : i64, scratch_operands = 0 : i64, tpu.core_type = #tpu.core_type<tc>, window_params = [{transform_indices = @transform_0, window_bounds = array<i64: 128, 128>}, {pipeline_mode = #tpu.pipeline_mode<synchronous>, transform_indices = @transform_1, window_bounds = array<i64: 128, 128>}, {pipeline_mode = #tpu.pipeline_mode<synchronous>, transform_indices = @transform_2, window_bounds = array<i64: 1, 128>}, {pipeline_mode = #tpu.pipeline_mode<synchronous>, transform_indices = @transform_3, window_bounds = array<i64: 1, 128>}, {transform_indices = @transform_4, window_bounds = array<i64: 1, 1>}, {transform_indices = @transform_5, window_bounds = array<i64: 1, 1, 128>}]} {
    %c0 = arith.constant 0 : index
    %c0_0 = arith.constant 0 : index
    %0 = vector.load %arg1[%c0, %c0_0] : memref<128x128xf32, #tpu.memory_space<vmem>>, vector<128x128xf32>
    %1 = arith.truncf %0 : vector<128x128xf32> to vector<128x128xbf16>
    %c0_1 = arith.constant 0 : index
    %c0_2 = arith.constant 0 : index
    %2 = vector.load %arg2[%c0_1, %c0_2] : memref<128x128xbf16, #tpu.memory_space<vmem>>, vector<128x128xbf16>
    %cst = arith.constant dense<0.000000e+00> : vector<128x128xf32>
    %3 = tpu.matmul %1, %2, %cst {dimension_numbers = #tpu.dot_dimension_numbers<[1], [0], [0], [1], [0, 0, 1, 1], [], []>} : vector<128x128xbf16>, vector<128x128xbf16>, vector<128x128xf32> -> vector<128x128xf32>
    %c0_3 = arith.constant 0 : index
    %c0_4 = arith.constant 0 : index
    %4 = vector.load %arg3[%c0_3, %c0_4] : memref<1x128xf32, #tpu.memory_space<vmem>>, vector<1x128xf32>
    %5 = vector.broadcast %4 : vector<1x128xf32> to vector<128x128xf32>
    %6 = arith.addf %3, %5 : vector<128x128xf32>
    %cst_5 = arith.constant 0.000000e+00 : f32
    %7 = vector.broadcast %cst_5 : f32 to vector<128x128xf32>
    %8 = arith.maximumf %6, %7 : vector<128x128xf32>
    %c0_6 = arith.constant 0 : index
    %c0_7 = arith.constant 0 : index
    %9 = vector.load %arg4[%c0_6, %c0_7] : memref<1x128xf32, #tpu.memory_space<vmem>>, vector<1x128xf32>
    "tpu.trace_start"() <{level = 10 : i32, message = "oh,bh->ob"}> : () -> ()
    %cst_8 = arith.constant dense<0.000000e+00> : vector<1x128xf32>
    %10 = tpu.matmul %9, %8, %cst_8 {dimension_numbers = #tpu.dot_dimension_numbers<[1], [1], [0], [0], [0, 0, 1, 0], [], []>} : vector<1x128xf32>, vector<128x128xf32>, vector<1x128xf32> -> vector<1x128xf32>
    "tpu.trace_stop"() : () -> ()
    %c0_9 = arith.constant 0 : index
    %c0_10 = arith.constant 0 : index
    %11 = memref.load %arg5[%c0_9, %c0_10] : memref<1x1xf32, #tpu.memory_space<smem>>
    %12 = vector.broadcast %11 : f32 to vector<1x128xf32>
    %13 = arith.addf %10, %12 : vector<1x128xf32>
    %c0_11 = arith.constant 0 : index
    %c0_12 = arith.constant 0 : index
    %c0_13 = arith.constant 0 : index
    %14 = vector.load %arg6[%c0_11, %c0_12, %c0_13] : memref<1x1x128xf32, #tpu.memory_space<vmem>>, vector<1x1x128xf32>
    %15 = vector.shape_cast %14 : vector<1x1x128xf32> to vector<1x128xf32>
    %16 = vector.shape_cast %13 : vector<1x128xf32> to vector<1x1x128xf32>
    tpu.vector_store %arg6[%c0_11, %c0_12, %c0_13], %16 {strides = array<i32>} : memref<1x1x128xf32, #tpu.memory_space<vmem>>, vector<1x1x128xf32>,
    return
  }
  func.func @transform_0(%arg0: i32) -> (i32, i32) {
    %c0_i32 = arith.constant 0 : i32
    %c0_i32_0 = arith.constant 0 : i32
    return %arg0, %c0_i32 : i32, i32
  }
  func.func @transform_1(%arg0: i32) -> (i32, i32) {
    %c0_i32 = arith.constant 0 : i32
    %c0_i32_0 = arith.constant 0 : i32
    %c0_i32_1 = arith.constant 0 : i32
    return %c0_i32, %c0_i32_0 : i32, i32
  }
  func.func @transform_2(%arg0: i32) -> (i32, i32) {
    %c0_i32 = arith.constant 0 : i32
    %c0_i32_0 = arith.constant 0 : i32
    %c0_i32_1 = arith.constant 0 : i32
    return %c0_i32, %c0_i32_0 : i32, i32
  }
  func.func @transform_3(%arg0: i32) -> (i32, i32) {
    %c0_i32 = arith.constant 0 : i32
    %c0_i32_0 = arith.constant 0 : i32
    %c0_i32_1 = arith.constant 0 : i32
    return %c0_i32, %c0_i32_0 : i32, i32
  }
  func.func @transform_4(%arg0: i32) -> (i32, i32) {
    %c0_i32 = arith.constant 0 : i32
    %c0_i32_0 = arith.constant 0 : i32
    %c0_i32_1 = arith.constant 0 : i32
    return %c0_i32, %c0_i32_0 : i32, i32
  }
  func.func @transform_5(%arg0: i32) -> (i32, i32, i32) {
    %c0_i32 = arith.constant 0 : i32
    %c0_i32_0 = arith.constant 0 : i32
    %c0_i32_1 = arith.constant 0 : i32
    return %arg0, %c0_i32, %c0_i32_0 : i32, i32, i32
  }
}

</mosaic_0001>

<llo_original>
// kernel: tpu_custom_call.1
$region0: #{tpu_custom_call.1}
  #allocation0 [shape = 'u32[]', space=smem, size = 0x4, offset = 0x4, fixed_abs, tag = 'smem constant byte address 0x4 - core index']
  #allocation1 [shape = 'u32[144,128]{1,0:T(1,128)}', space=vmem, size = 0x12000, scoped, tag = 'internal scratch']
  #allocation2 [shape = 'f32[1,1]{1,0:T(1,128)S(6)}', space=smem, size = 0x200, scoped, tag = 'scoped memory for tpu_custom_call.1']
  %s0 = inlined_call_operand.hbm [shape: f32[256,128], index: 0, kind: input, shape index: {}]
  %s1 = inlined_call_operand.hbm [shape: bf16[128,128], index: 1, kind: input, shape index: {}]
  %s2 = inlined_call_operand.vmem [shape: f32[1,128], index: 2, kind: input, shape index: {}]
  %s3 = inlined_call_operand.vmem [shape: f32[1,128], index: 3, kind: input, shape index: {}]
  %s4 = inlined_call_operand.<no memory space> [shape: f32[1,1], index: 4, kind: input, shape index: {}]
  %s5 = inlined_call_operand.hbm [shape: f32[2,1,128], index: 5, kind: output, shape index: {}]
  %s6 = sld [smem:[#allocation0]]
  $region61: #{tpu_custom_call.1} parent=0
    _
  %s8 = ssub.s32 1, %s6
  %s9 = scalar_select 0, %s8, %s6
  %10 = sst [smem:[#allocation2]] %s4
  $region1: #{tpu_custom_call.1} parent=0
    #allocation3 [shape = 'u8[131072]{0}', space=vmem, size = 0x20000, scoped, tag = 'input window, operand 0']
    #allocation4 [shape = 's32[2]{0}', space=sflag, size = 0x8, scoped, tag = 'scoped memory for tpu_custom_call.1']
    #allocation5 [shape = 's32[2]{0}', space=sflag, size = 0x8, scoped, tag = 'scoped memory for tpu_custom_call.1']
    #allocation6 [shape = 'u8[32768]{0}', space=vmem, size = 0x8000, scoped, tag = 'input window, operand 1, single buffered']
    #allocation7 [shape = 's32[1]{0}', space=sflag, size = 0x4, scoped, tag = 'scoped memory for tpu_custom_call.1']
    #allocation8 [shape = 'u8[1024]{0}', space=vmem, size = 0x400, scoped, tag = 'output window, operand 0']
    %11 = vsyncpa [#allocation4], 0
    %s12 = scalar_lea.sflag [#allocation4], 1
    %13 = vsyncpa %s12, 0
    %14 = vsyncpa [#allocation7], 0
    %15 = vsyncpa [#allocation5], 0
    %s16 = scalar_lea.sflag [#allocation5], 1
    %17 = vsyncpa %s16, 0
    loop: start=0, step=1, limit=4
    $region2: #{tpu_custom_call.1} parent=1 // loop_pre_header
      _
    $region3: #{tpu_custom_call.1} parent=1 // loop_header
      %s19 = sphi 0, %s23
      %p20 = scmp.ge.s32.totalorder %s19, 4
      %s29 = sphi 0, %s31
      %s32 = sphi 0, %s29
      %s33 = sphi 0, %s32
      %s49 = sphi 0, %s33
      %s53 = sphi 0, %s53
      %s55 = sphi 0, %s53
      %s56 = sphi 0, %s55
      %s70 = sphi 0, %s56
      %s74 = sphi 0, %s74
      %s76 = sphi 0, %s74
      %s77 = sphi 0, %s76
      %s91 = sphi 0, %s77
      %s95 = sphi 0, %s95
      %s97 = sphi 0, %s95
      %s98 = sphi 0, %s97
      %s112 = sphi 0, %s98
      %s116 = sphi 0, %s116
      %s118 = sphi 0, %s116
      %s119 = sphi 0, %s118
      %s133 = sphi 0, %s119
      %s139 = sphi 0, %s141
      %s142 = sphi 0, %s139
      %s143 = sphi 0, %s142
      %s159 = sphi 0, %s143
    $region4: #{tpu_custom_call.1} parent=1 // loop_header_branch
      %22 = sbr.rel (%p20) target = $region8
    $region5: #{tpu_custom_call.1} parent=1 // loop_body
      %s24 = ssub.s32 %s19, 1
      %s25 = ssub.s32 %s19, 2
      %s26 = sadd.s32 %s19, 1
      %s27 = ssub.s32 %s19, %s26
      %p28 = scmp.eq.s32.totalorder %s27, 0
      %s30 = sadd.s32 %s29, 1
      %s31 = scalar_select %p28, %s29, %s30
      %p34 = pneg %p28
      %p35 = scmp.eq.s32.totalorder %s19, 1
      %p36 = por %p34, %p35
      %p37 = scmp.ne.s32.totalorder %s29, %s32
      %p38 = scmp.eq.s32.totalorder %s19, 0
      %p39 = por %p37, %p38
      %p40 = scmp.ne.s32.totalorder %s29, %s32
      %p41 = scmp.eq.s32.totalorder %s24, 1
      %p42 = por %p40, %p41
      %p43 = scmp.ne.s32.totalorder %s32, %s33
      %p44 = scmp.eq.s32.totalorder %s24, 0
      %p45 = por %p43, %p44
      %p46 = scmp.ne.s32.totalorder %s32, %s33
      %p47 = scmp.eq.s32.totalorder %s25, 1
      %p48 = por %p46, %p47
      %p50 = scmp.ne.s32.totalorder %s33, %s49
      %p51 = scmp.eq.s32.totalorder %s25, 0
      %p52 = por %p50, %p51
      %s54 = sadd.s32 %s53, 1
      %p57 = scmp.eq.s32.totalorder %s19, 1
      %p58 = scmp.ne.s32.totalorder %s53, %s55
      %p59 = scmp.eq.s32.totalorder %s19, 0
      %p60 = por %p58, %p59
      %p61 = scmp.ne.s32.totalorder %s53, %s55
      %p62 = scmp.eq.s32.totalorder %s24, 1
      %p63 = por %p61, %p62
      %p64 = scmp.ne.s32.totalorder %s55, %s56
      %p65 = scmp.eq.s32.totalorder %s24, 0
      %p66 = por %p64, %p65
      %p67 = scmp.ne.s32.totalorder %s55, %s56
      %p68 = scmp.eq.s32.totalorder %s25, 1
      %p69 = por %p67, %p68
      %p71 = scmp.ne.s32.totalorder %s56, %s70
      %p72 = scmp.eq.s32.totalorder %s25, 0
      %p73 = por %p71, %p72
      %s75 = sadd.s32 %s74, 1
      %p78 = scmp.eq.s32.totalorder %s19, 1
      %p79 = scmp.ne.s32.totalorder %s74, %s76
      %p80 = scmp.eq.s32.totalorder %s19, 0
      %p81 = por %p79, %p80
      %p82 = scmp.ne.s32.totalorder %s74, %s76
      %p83 = scmp.eq.s32.totalorder %s24, 1
      %p84 = por %p82, %p83
      %p85 = scmp.ne.s32.totalorder %s76, %s77
      %p86 = scmp.eq.s32.totalorder %s24, 0
      %p87 = por %p85, %p86
      %p88 = scmp.ne.s32.totalorder %s76, %s77
      %p89 = scmp.eq.s32.totalorder %s25, 1
      %p90 = por %p88, %p89
      %p92 = scmp.ne.s32.totalorder %s77, %s91
      %p93 = scmp.eq.s32.totalorder %s25, 0
      %p94 = por %p92, %p93
      %s96 = sadd.s32 %s95, 1
      %p99 = scmp.eq.s32.totalorder %s19, 1
      %p100 = scmp.ne.s32.totalorder %s95, %s97
      %p101 = scmp.eq.s32.totalorder %s19, 0
      %p102 = por %p100, %p101
      %p103 = scmp.ne.s32.totalorder %s95, %s97
      %p104 = scmp.eq.s32.totalorder %s24, 1
      %p105 = por %p103, %p104
      %p106 = scmp.ne.s32.totalorder %s97, %s98
      %p107 = scmp.eq.s32.totalorder %s24, 0
      %p108 = por %p106, %p107
      %p109 = scmp.ne.s32.totalorder %s97, %s98
      %p110 = scmp.eq.s32.totalorder %s25, 1
      %p111 = por %p109, %p110
      %p113 = scmp.ne.s32.totalorder %s98, %s112
      %p114 = scmp.eq.s32.totalorder %s25, 0
      %p115 = por %p113, %p114
      %s117 = sadd.s32 %s116, 1
      %p120 = scmp.eq.s32.totalorder %s19, 1
      %p121 = scmp.ne.s32.totalorder %s116, %s118
      %p122 = scmp.eq.s32.totalorder %s19, 0
      %p123 = por %p121, %p122
      %p124 = scmp.ne.s32.totalorder %s116, %s118
      %p125 = scmp.eq.s32.totalorder %s24, 1
      %p126 = por %p124, %p125
      %p127 = scmp.ne.s32.totalorder %s118, %s119
      %p128 = scmp.eq.s32.totalorder %s24, 0
      %p129 = por %p127, %p128
      %p130 = scmp.ne.s32.totalorder %s118, %s119
      %p131 = scmp.eq.s32.totalorder %s25, 1
      %p132 = por %p130, %p131
      %p134 = scmp.ne.s32.totalorder %s119, %s133
      %p135 = scmp.eq.s32.totalorder %s25, 0
      %p136 = por %p134, %p135
      %s137 = ssub.s32 %s19, %s26
      %p138 = scmp.eq.s32.totalorder %s137, 0
      %s140 = sadd.s32 %s139, 1
      %s141 = scalar_select %p138, %s139, %s140
      %p144 = pneg %p138
      %p145 = scmp.eq.s32.totalorder %s19, 1
      %p146 = por %p144, %p145
      %p147 = scmp.ne.s32.totalorder %s139, %s142
      %p148 = scmp.eq.s32.totalorder %s19, 0
      %p149 = por %p147, %p148
      %p150 = scmp.ne.s32.totalorder %s139, %s142
      %p151 = scmp.eq.s32.totalorder %s24, 1
      %p152 = por %p150, %p151
      %p153 = scmp.ne.s32.totalorder %s142, %s143
      %p154 = scmp.eq.s32.totalorder %s24, 0
      %p155 = por %p153, %p154
      %p156 = scmp.ne.s32.totalorder %s142, %s143
      %p157 = scmp.eq.s32.totalorder %s25, 1
      %p158 = por %p156, %p157
      %p160 = scmp.ne.s32.totalorder %s143, %s159
      %p161 = scmp.eq.s32.totalorder %s25, 0
      %p162 = por %p160, %p161
      %p163 = scmp.le.s32.totalorder 1, %s19
      %p164 = scmp.lt.s32.totalorder %s19, 3
      %p165 = pnand %p163, %p164
      %p166 = pneg %p165
      // Predicated region
      $region9: #{tpu_custom_call.1} parent=5 // pred_check
        _
      $region10: #{tpu_custom_call.1} parent=5 // pred_check_branch
        %168 = sbr.rel (%p165) target = $region12
      $region11: #{tpu_custom_call.1} parent=5 // pred_region
        %s169 = ssub.s32 %s19, 1
        // Predicated region
        $region13: #{tpu_custom_call.1} parent=11 // pred_check
          %p170 = pneg %p66
        $region14: #{tpu_custom_call.1} parent=11 // pred_check_branch
          %172 = sbr.rel (%p170) target = $region16
        $region15: #{tpu_custom_call.1} parent=11 // pred_region
          %s174 = ssub.s32 1024, 1024
          %175 = vsyncadd [#allocation7], %s174
          %s176 = sshll.u32 [#allocation6], 4
          %s177 = int_to_ptr.vmem [resolvable:$true] %s176
          %182 = dma.hbm_to_vmem [thread:$0]  %s1, 1024, %s177, [#allocation7], 64, 64, 4
        $region16: #{tpu_custom_call.1} parent=11 // pred_fallthru
          _
        // Predicated region
        $region17: #{tpu_custom_call.1} parent=11 // pred_check
          %p183 = pneg %p87
        $region18: #{tpu_custom_call.1} parent=11 // pred_check_branch
          %185 = sbr.rel (%p183) target = $region20
        $region19: #{tpu_custom_call.1} parent=11 // pred_region
          _
        $region20: #{tpu_custom_call.1} parent=11 // pred_fallthru
          _
        // Predicated region
        $region21: #{tpu_custom_call.1} parent=11 // pred_check
          %p186 = pneg %p108
        $region22: #{tpu_custom_call.1} parent=11 // pred_check_branch
          %188 = sbr.rel (%p186) target = $region24
        $region23: #{tpu_custom_call.1} parent=11 // pred_region
          _
        $region24: #{tpu_custom_call.1} parent=11 // pred_fallthru
          _
        // Predicated region
        $region25: #{tpu_custom_call.1} parent=11 // pred_check
          %p189 = pneg %p129
        $region26: #{tpu_custom_call.1} parent=11 // pred_check_branch
          %191 = sbr.rel (%p189) target = $region28
        $region27: #{tpu_custom_call.1} parent=11 // pred_region
          _
        $region28: #{tpu_custom_call.1} parent=11 // pred_fallthru
          _
      $region12: #{tpu_custom_call.1} parent=5 // pred_fallthru
        _
      %p192 = scmp.lt.s32.totalorder %s19, 2
      // Predicated region
      $region29: #{tpu_custom_call.1} parent=5 // pred_check
        %p193 = pneg %p192
      $region30: #{tpu_custom_call.1} parent=5 // pred_check_branch
        %195 = sbr.rel (%p193) target = $region32
      $region31: #{tpu_custom_call.1} parent=5 // pred_region
        // Predicated region
        $region33: #{tpu_custom_call.1} parent=31 // pred_check
          %p196 = pneg %p39
        $region34: #{tpu_custom_call.1} parent=31 // pred_check_branch
          %198 = sbr.rel (%p196) target = $region36
        $region35: #{tpu_custom_call.1} parent=31 // pred_region
          %s199 = sand.u32 %s29, 1
          %s200 = scalar_lea.sflag [#allocation4], %s199
          %s201 = sand.u32 %s29, 1
          %s202 = smul.addr %s201, 128
          %s203 = scalar_lea.vmem [#allocation3], %s202
          %s204 = smul.u32 16, %s19
          %s206 = ssub.s32 2048, 2048
          %207 = vsyncadd %s200, %s206
          %s208 = smul.addr %s204, 128
          %s209 = scalar_lea.hbm %s0, %s208
          %s210 = sshll.u32 %s203, 4
          %s211 = int_to_ptr.vmem [resolvable:$true] %s210
          %216 = dma.hbm_to_vmem [thread:$0]  %s209, 2048, %s211, %s200, 128, 128, 8
        $region36: #{tpu_custom_call.1} parent=31 // pred_fallthru
          _
      $region32: #{tpu_custom_call.1} parent=5 // pred_fallthru
        _
      %p217 = scmp.le.s32.totalorder 1, %s19
      %p218 = scmp.lt.s32.totalorder %s19, 3
      %p219 = pnand %p217, %p218
      %p220 = pneg %p219
      // Predicated region
      $region37: #{tpu_custom_call.1} parent=5 // pred_check
        _
      $region38: #{tpu_custom_call.1} parent=5 // pred_check_branch
        %222 = sbr.rel (%p219) target = $region40
      $region39: #{tpu_custom_call.1} parent=5 // pred_region
        %s223 = ssub.s32 %s19, 1
        %s224 = sand.u32 %s32, 1
        %s225 = scalar_lea.sflag [#allocation4], %s224
        %s226 = sand.u32 %s32, 1
        %s227 = smul.addr %s226, 128
        %s228 = scalar_lea.vmem [#allocation3], %s227
        // Predicated region
        $region41: #{tpu_custom_call.1} parent=39 // pred_check
          %p229 = pneg %p45
        $region42: #{tpu_custom_call.1} parent=39 // pred_check_branch
          %231 = sbr.rel (%p229) target = $region44
        $region43: #{tpu_custom_call.1} parent=39 // pred_region
          %232 = dma.done %s225, 2048
        $region44: #{tpu_custom_call.1} parent=39 // pred_fallthru
          _
        // Predicated region
        $region45: #{tpu_custom_call.1} parent=39 // pred_check
          %p233 = pneg %p66
        $region46: #{tpu_custom_call.1} parent=39 // pred_check_branch
          %235 = sbr.rel (%p233) target = $region48
        $region47: #{tpu_custom_call.1} parent=39 // pred_region
          %236 = dma.done [#allocation7], 1024
        $region48: #{tpu_custom_call.1} parent=39 // pred_fallthru
          _
        %s237 = sand.u32 %s32, 1
        %s238 = scalar_lea.sflag [#allocation4], %s237
        %s239 = sand.u32 %s32, 1
        %s240 = smul.addr %s239, 128
        %s241 = scalar_lea.vmem [#allocation3], %s240
        %p242 = pneg %p45
        %p243 = pneg %p42
        %p244 = pneg %p66
        %p245 = pneg %p63
        %p246 = pneg %p87
        %p247 = pneg %p84
        %p248 = pneg %p108
        %p249 = pneg %p105
        %p250 = pneg %p129
        %p251 = pneg %p126
        %p252 = pneg %p155
        %p253 = pneg %p152
        %s254 = sand.u32 %s142, 1
        %s255 = scalar_lea.sflag [#allocation5], %s254
        %s256 = sand.u32 %s142, 1
        %s257 = scalar_lea.vmem [#allocation8], %s256
        %s258 = smul.u32 16, %s24
        %v260 = vld [vmem:[%s228] sm:$0xff]
        %v261 = vld [vmem:[%s228 + $0x8] sm:$0xff]
        %v262 = vld [vmem:[%s228 + $0x10] sm:$0xff]
        %v263 = vld [vmem:[%s228 + $0x18] sm:$0xff]
        %v264 = vld [vmem:[%s228 + $0x20] sm:$0xff]
        %v265 = vld [vmem:[%s228 + $0x28] sm:$0xff]
        %v266 = vld [vmem:[%s228 + $0x30] sm:$0xff]
        %v267 = vld [vmem:[%s228 + $0x38] sm:$0xff]
        %v268 = vld [vmem:[%s228 + $0x40] sm:$0xff]
        %v269 = vld [vmem:[%s228 + $0x48] sm:$0xff]
        %v270 = vld [vmem:[%s228 + $0x50] sm:$0xff]
        %v271 = vld [vmem:[%s228 + $0x58] sm:$0xff]
        %v272 = vld [vmem:[%s228 + $0x60] sm:$0xff]
        %v273 = vld [vmem:[%s228 + $0x68] sm:$0xff]
        %v274 = vld [vmem:[%s228 + $0x70] sm:$0xff]
        %v275 = vld [vmem:[%s228 + $0x78] sm:$0xff]
        %v276 = vpack.c.bf16 %v261, %v260
        %v277 = vpack.c.bf16 %v263, %v262
        %v278 = vpack.c.bf16 %v265, %v264
        %v279 = vpack.c.bf16 %v267, %v266
        %v280 = vpack.c.bf16 %v269, %v268
        %v281 = vpack.c.bf16 %v271, %v270
        %v282 = vpack.c.bf16 %v273, %v272
        %v283 = vpack.c.bf16 %v275, %v274
        %v284 = vld [vmem:[#allocation6] sm:$0xf]
        %v285 = vld [vmem:[#allocation6 + $0x4] sm:$0xf]
        %v286 = vld [vmem:[#allocation6 + $0x8] sm:$0xf]
        %v287 = vld [vmem:[#allocation6 + $0xc] sm:$0xf]
        %v288 = vld [vmem:[#allocation6 + $0x10] sm:$0xf]
        %v289 = vld [vmem:[#allocation6 + $0x14] sm:$0xf]
        %v290 = vld [vmem:[#allocation6 + $0x18] sm:$0xf]
        %v291 = vld [vmem:[#allocation6 + $0x1c] sm:$0xf]
        %v292 = vld [vmem:[#allocation6 + $0x20] sm:$0xf]
        %v293 = vld [vmem:[#allocation6 + $0x24] sm:$0xf]
        %v294 = vld [vmem:[#allocation6 + $0x28] sm:$0xf]
        %v295 = vld [vmem:[#allocation6 + $0x2c] sm:$0xf]
        %v296 = vld [vmem:[#allocation6 + $0x30] sm:$0xf]
        %v297 = vld [vmem:[#allocation6 + $0x34] sm:$0xf]
        %v298 = vld [vmem:[#allocation6 + $0x38] sm:$0xf]
        %v299 = vld [vmem:[#allocation6 + $0x3c] sm:$0xf]
        %v300 = vld [vmem:[%s2] sm:$0x1]
        %v302 = vlaneseq
        %v303 = vshrl.u32 %v302, 7
        %v304 = vsub.s32 0, %v303
        %v305 = vrot.slane %v300, %v304
        %v323 = vunpack.c.l.b16 %v284
        %v324 = vunpack.c.l.b16 %v285
        %v325 = vunpack.c.l.b16 %v286
        %v326 = vunpack.c.l.b16 %v287
        %v327 = vunpack.c.l.b16 %v288
        %v328 = vunpack.c.l.b16 %v289
        %v329 = vunpack.c.l.b16 %v290
        %v330 = vunpack.c.l.b16 %v291
        %v331 = vunpack.c.l.b16 %v292
        %v332 = vunpack.c.l.b16 %v293
        %v333 = vunpack.c.l.b16 %v294
        %v334 = vunpack.c.l.b16 %v295
        %v335 = vunpack.c.l.b16 %v296
        %v336 = vunpack.c.l.b16 %v297
        %v337 = vunpack.c.l.b16 %v298
        %v338 = vunpack.c.l.b16 %v299
        %v339 = vpack.c.b16 %v324, %v323
        %v340 = vpack.c.b16 %v326, %v325
        %v341 = vpack.c.b16 %v328, %v327
        %v342 = vpack.c.b16 %v330, %v329
        %v343 = vpack.c.b16 %v332, %v331
        %v344 = vpack.c.b16 %v334, %v333
        %v345 = vpack.c.b16 %v336, %v335
        %v346 = vpack.c.b16 %v338, %v337
        %355 = vmatprep.subr.bf16.mxu0 0
        %356 = vmatpush1.bf16.msra.mxu0 %v339
        %357 = vmatprep.subr.bf16.mxu0 0
        %358 = vmatpush1.bf16.msra.mxu0 %v340
        %359 = vmatprep.subr.bf16.mxu0 0
        %360 = vmatpush1.bf16.msra.mxu0 %v341
        %361 = vmatprep.subr.bf16.mxu0 0
        %362 = vmatpush1.bf16.msra.mxu0 %v342
        %363 = vmatprep.subr.bf16.mxu0 0
        %364 = vmatpush1.bf16.msra.mxu0 %v343
        %365 = vmatprep.subr.bf16.mxu0 0
        %366 = vmatpush1.bf16.msra.mxu0 %v344
        %367 = vmatprep.subr.bf16.mxu0 0
        %368 = vmatpush1.bf16.msra.mxu0 %v345
        %369 = vmatprep.subr.bf16.mxu0 0
        %370 = vmatpush1.bf16.msra.mxu0 %v346
        %371 = vmatprep.subr.bf16.mxu0 0
        %372 = vmatpush1.bf16.msra.mxu0 0
        %373 = vmatprep.subr.bf16.mxu0 0
        %374 = vmatpush1.bf16.msra.mxu0 0
        %375 = vmatprep.subr.bf16.mxu0 0
        %376 = vmatpush1.bf16.msra.mxu0 0
        %377 = vmatprep.subr.bf16.mxu0 0
        %378 = vmatpush1.bf16.msra.mxu0 0
        %379 = vmatprep.subr.bf16.mxu0 0
        %380 = vmatpush1.bf16.msra.mxu0 0
        %381 = vmatprep.subr.bf16.mxu0 0
        %382 = vmatpush1.bf16.msra.mxu0 0
        %383 = vmatprep.subr.bf16.mxu0 0
        %384 = vmatpush1.bf16.msra.mxu0 0
        %385 = vmatprep.subr.bf16.mxu0 0
        %386 = vmatpush1.bf16.msra.mxu0 0
        %387 = vmatprep.mubr.bf16.mxu0 0
        %388 = vmatmul.mubr.bf16.gmra.mrb[0].mxu0 %v276
        %v389 = vpop.f32.mrb[0].mxu0
        %v390 = vadd.f32 %v305, %v389
        %v391 = vpop.f32.mrb[0].mxu0
        %v392 = vpop.f32.mrb[0].mxu0
        %v393 = vadd.f32 %v305, %v392
        %v394 = vpop.f32.mrb[0].mxu0
        %395 = vmatprep.mubr.bf16.mxu0 0
        %396 = vmatmul.mubr.bf16.gmra.mrb[0].mxu0 %v277
        %v397 = vpop.f32.mrb[0].mxu0
        %v398 = vadd.f32 %v305, %v397
        %v399 = vpop.f32.mrb[0].mxu0
        %v400 = vpop.f32.mrb[0].mxu0
        %v401 = vadd.f32 %v305, %v400
        %v402 = vpop.f32.mrb[0].mxu0
        %403 = vmatprep.mubr.bf16.mxu0 0
        %404 = vmatmul.mubr.bf16.gmra.mrb[0].mxu0 %v278
        %v405 = vpop.f32.mrb[0].mxu0
        %v406 = vadd.f32 %v305, %v405
        %v407 = vpop.f32.mrb[0].mxu0
        %v408 = vpop.f32.mrb[0].mxu0
        %v409 = vadd.f32 %v305, %v408
        %v410 = vpop.f32.mrb[0].mxu0
        %411 = vmatprep.mubr.bf16.mxu0 0
        %412 = vmatmul.mubr.bf16.gmra.mrb[0].mxu0 %v279
        %v413 = vpop.f32.mrb[0].mxu0
        %v414 = vadd.f32 %v305, %v413
        %v415 = vpop.f32.mrb[0].mxu0
        %v416 = vpop.f32.mrb[0].mxu0
        %v417 = vadd.f32 %v305, %v416
        %v418 = vpop.f32.mrb[0].mxu0
        %419 = vmatprep.mubr.bf16.mxu0 0
        %420 = vmatmul.mubr.bf16.gmra.mrb[0].mxu0 %v280
        %v421 = vpop.f32.mrb[0].mxu0
        %v422 = vadd.f32 %v305, %v421
        %v423 = vpop.f32.mrb[0].mxu0
        %v424 = vpop.f32.mrb[0].mxu0
        %v425 = vadd.f32 %v305, %v424
        %v426 = vpop.f32.mrb[0].mxu0
        %427 = vmatprep.mubr.bf16.mxu0 0
        %428 = vmatmul.mubr.bf16.gmra.mrb[0].mxu0 %v281
        %v429 = vpop.f32.mrb[0].mxu0
        %v430 = vadd.f32 %v305, %v429
        %v431 = vpop.f32.mrb[0].mxu0
        %v432 = vpop.f32.mrb[0].mxu0
        %v433 = vadd.f32 %v305, %v432
        %v434 = vpop.f32.mrb[0].mxu0
        %435 = vmatprep.mubr.bf16.mxu0 0
        %436 = vmatmul.mubr.bf16.gmra.mrb[0].mxu0 %v282
        %v437 = vpop.f32.mrb[0].mxu0
        %v438 = vadd.f32 %v305, %v437
        %v439 = vpop.f32.mrb[0].mxu0
        %v440 = vpop.f32.mrb[0].mxu0
        %v441 = vadd.f32 %v305, %v440
        %v442 = vpop.f32.mrb[0].mxu0
        %443 = vmatprep.mubr.bf16.mxu0 0
        %444 = vmatmul.mubr.bf16.gmra.mrb[0].mxu0 %v283
        %v445 = vpop.f32.mrb[0].mxu0
        %v446 = vadd.f32 %v305, %v445
        %v447 = vpop.f32.mrb[0].mxu0
        %v448 = vpop.f32.mrb[0].mxu0
        %v449 = vadd.f32 %v305, %v448
        %v450 = vpop.f32.mrb[0].mxu0
        %451 = vdwg.mxu0
        %v452 = vmax.f32 %v390, 0.0
        %v453 = vmax.f32 %v393, 0.0
        %v454 = vmax.f32 %v398, 0.0
        %v455 = vmax.f32 %v401, 0.0
        %v456 = vmax.f32 %v406, 0.0
        %v457 = vmax.f32 %v409, 0.0
        %v458 = vmax.f32 %v414, 0.0
        %v459 = vmax.f32 %v417, 0.0
        %v460 = vmax.f32 %v422, 0.0
        %v461 = vmax.f32 %v425, 0.0
        %v462 = vmax.f32 %v430, 0.0
        %v463 = vmax.f32 %v433, 0.0
        %v464 = vmax.f32 %v438, 0.0
        %v465 = vmax.f32 %v441, 0.0
        %v466 = vmax.f32 %v446, 0.0
        %v467 = vmax.f32 %v449, 0.0
        %v468 = vld [vmem:[%s3] sm:$0x1]
        %s469 = sld [smem:[#allocation2]]
        %v470 = vstv %s469
        %471 = vmatprep.subr.mxu0 0.0
        %472 = vmatpush1.xpose.msra.mxu0 %v452
        %473 = vmatprep.subr.mxu0 0.0
        %474 = vmatpush1.xpose.msra.mxu0 %v453
        %475 = vmatprep.subr.mxu0 0.0
        %476 = vmatpush1.xpose.msra.mxu0 %v454
        %477 = vmatprep.subr.mxu0 0.0
        %478 = vmatpush1.xpose.msra.mxu0 %v455
        %479 = vmatprep.subr.mxu0 0.0
        %480 = vmatpush1.xpose.msra.mxu0 %v456
        %481 = vmatprep.subr.mxu0 0.0
        %482 = vmatpush1.xpose.msra.mxu0 %v457
        %483 = vmatprep.subr.mxu0 0.0
        %484 = vmatpush1.xpose.msra.mxu0 %v458
        %485 = vmatprep.subr.mxu0 0.0
        %486 = vmatpush1.xpose.msra.mxu0 %v459
        %487 = vmatprep.subr.mxu0 0.0
        %488 = vmatpush1.xpose.msra.mxu0 %v460
        %489 = vmatprep.subr.mxu0 0.0
        %490 = vmatpush1.xpose.msra.mxu0 %v461
        %491 = vmatprep.subr.mxu0 0.0
        %492 = vmatpush1.xpose.msra.mxu0 %v462
        %493 = vmatprep.subr.mxu0 0.0
        %494 = vmatpush1.xpose.msra.mxu0 %v463
        %495 = vmatprep.subr.mxu0 0.0
        %496 = vmatpush1.xpose.msra.mxu0 %v464
        %497 = vmatprep.subr.mxu0 0.0
        %498 = vmatpush1.xpose.msra.mxu0 %v465
        %499 = vmatprep.subr.mxu0 0.0
        %500 = vmatpush1.xpose.msra.mxu0 %v466
        %501 = vmatprep.subr.mxu0 0.0
        %502 = vmatpush1.xpose.msra.mxu0 %v467
        %503 = vmatprep.subr.mxu0 0.0
        %504 = vmatpush1.xpose.msra.mxu0 0.0
        %505 = vmatprep.subr.mxu0 0.0
        %506 = vmatpush1.xpose.msra.mxu0 0.0
        %507 = vmatprep.subr.mxu0 0.0
        %508 = vmatpush1.xpose.msra.mxu0 0.0
        %509 = vmatprep.subr.mxu0 0.0
        %510 = vmatpush1.xpose.msra.mxu0 0.0
        %511 = vmatprep.subr.mxu0 0.0
        %512 = vmatpush1.xpose.msra.mxu0 0.0
        %513 = vmatprep.subr.mxu0 0.0
        %514 = vmatpush1.xpose.msra.mxu0 0.0
        %515 = vmatprep.subr.mxu0 0.0
        %516 = vmatpush1.xpose.msra.mxu0 0.0
        %517 = vmatprep.subr.mxu0 0.0
        %518 = vmatpush1.xpose.msra.mxu0 0.0
        %519 = vmatprep.subr.mxu0 0.0
        %520 = vmatpush1.xpose.msra.mxu0 0.0
        %521 = vmatprep.subr.mxu0 0.0
        %522 = vmatpush1.xpose.msra.mxu0 0.0
        %523 = vmatprep.subr.mxu0 0.0
        %524 = vmatpush1.xpose.msra.mxu0 0.0
        %525 = vmatprep.subr.mxu0 0.0
        %526 = vmatpush1.xpose.msra.mxu0 0.0
        %527 = vmatprep.subr.mxu0 0.0
        %528 = vmatpush1.xpose.msra.mxu0 0.0
        %529 = vmatprep.subr.mxu0 0.0
        %530 = vmatpush1.xpose.msra.mxu0 0.0
        %531 = vmatprep.subr.mxu0 0.0
        %532 = vmatpush1.xpose.msra.mxu0 0.0
        %533 = vmatprep.subr.mxu0 0.0
        %534 = vmatpush1.xpose.msra.mxu0 0.0
        %535 = vmatprep.mubr.f32.mxu0 0.0
        %536 = vmatmul.mubr.f32.gmra.mrb[0].mxu0 %v468
        %v537 = vpop.f32.mrb[0].mxu0
        %v538 = vadd.f32 %v470, %v537
        %v539 = vpop.f32.mrb[0].mxu0
        %540 = vdwg.mxu0
        %541 = vst [vmem:[%s257] sm:$0x1] %v538
        %s542 = sand.u32 %s142, 1
        %s543 = scalar_lea.sflag [#allocation5], %s542
        %s544 = sand.u32 %s142, 1
        %s545 = scalar_lea.vmem [#allocation8], %s544
        // Predicated region
        $region49: #{tpu_custom_call.1} parent=39 // pred_check
          %p546 = pneg %p152
        $region50: #{tpu_custom_call.1} parent=39 // pred_check_branch
          %548 = sbr.rel (%p546) target = $region52
        $region51: #{tpu_custom_call.1} parent=39 // pred_region
          %s550 = ssub.s32 16, 16
          %551 = vsyncadd %s543, %s550
          %s552 = smul.addr %s24, 16
          %s553 = scalar_lea.hbm %s5, %s552
          %s555 = sshll.u32 %s545, 4
          %s556 = int_to_ptr.vmem [resolvable:$true] %s555
          %558 = dma.vmem_to_hbm [thread:$0]  %s556, 16, %s553, %s543
        $region52: #{tpu_custom_call.1} parent=39 // pred_fallthru
          _
      $region40: #{tpu_custom_call.1} parent=5 // pred_fallthru
        _
      %p559 = scmp.le.s32.totalorder 2, %s19
      // Predicated region
      $region53: #{tpu_custom_call.1} parent=5 // pred_check
        %p560 = pneg %p559
      $region54: #{tpu_custom_call.1} parent=5 // pred_check_branch
        %562 = sbr.rel (%p560) target = $region56
      $region55: #{tpu_custom_call.1} parent=5 // pred_region
        %s563 = ssub.s32 %s19, 2
        // Predicated region
        $region57: #{tpu_custom_call.1} parent=55 // pred_check
          %p564 = pneg %p158
        $region58: #{tpu_custom_call.1} parent=55 // pred_check_branch
          %566 = sbr.rel (%p564) target = $region60
        $region59: #{tpu_custom_call.1} parent=55 // pred_region
          %s567 = sand.u32 %s143, 1
          %s568 = scalar_lea.sflag [#allocation5], %s567
          %s569 = sand.u32 %s143, 1
          %s570 = scalar_lea.vmem [#allocation8], %s569
          %571 = dma.done %s568, 16
        $region60: #{tpu_custom_call.1} parent=55 // pred_fallthru
          _
      $region56: #{tpu_custom_call.1} parent=5 // pred_fallthru
        _
    $region6: #{tpu_custom_call.1} parent=1 // loop_footer
      %s23 = sadd.s32 1, %s19
    $region7: #{tpu_custom_call.1} parent=1 // loop_footer_branch
      %18 = sbr.rel target = $region3
    $region8: #{tpu_custom_call.1} parent=1 // loop_exit
      _
    %572 = vsyncpa [#allocation4], 1
    %s573 = scalar_lea.sflag [#allocation4], 1
    %574 = vsyncpa %s573, 1
    %575 = vsyncpa [#allocation7], 1
    %576 = vsyncpa [#allocation5], 1
    %s577 = scalar_lea.sflag [#allocation5], 1
    %578 = vsyncpa %s577, 1

</llo_original>
